<compile_context>
chip_gen: v7x
topology: tpu7x:2x2x1
jax: 0.10.0
libtpu: 0.0.40
codegen_flags: <defaults>
</compile_context>

<pallas_src>
import functools

import jax
import jax.numpy as jnp
from jax.experimental import pallas as pl
from jax.experimental.pallas import tpu as pltpu

LN_EPS = 1e-5  # PyTorch nn.LayerNorm default


def _round_up(n: int, m: int) -> int:
    return ((n + m - 1) // m) * m


# ----------------------------------------------------------------------------
# Kernel
# ----------------------------------------------------------------------------
def residual_reward_head_kernel(x_ref, w_ref, vec_ref, out_ref, *, H, O, num_blocks):
    x = x_ref[...].astype(jnp.float32)   # [TB, H]
    w = w_ref[...]                       # [(2*nb+1)*H, H]  compute dtype (bf16 or f32)
    vecs = vec_ref[...]                  # [4*nb+3, H]      f32 (biases + LN params)

    def dense(v, w_slice, b_row):
        # bf16 (or f32) operands on the MXU, f32 accumulation; bias add in f32.
        return jnp.dot(v.astype(w_slice.dtype), w_slice,
                       preferred_element_type=jnp.float32) + b_row

    def layer_norm(v, g, b):
        mu = jnp.mean(v, axis=-1, keepdims=True)
        var = jnp.mean((v - mu) ** 2, axis=-1, keepdims=True)
        return (v - mu) * jax.lax.rsqrt(var + LN_EPS) * g + b

    r = x
    for i in range(num_blocks):
        w1 = w[(2 * i + 0) * H:(2 * i + 1) * H, :]
        w2 = w[(2 * i + 1) * H:(2 * i + 2) * H, :]
        b1 = vecs[4 * i + 0:4 * i + 1, :]
        b2 = vecs[4 * i + 1:4 * i + 2, :]
        g_ = vecs[4 * i + 2:4 * i + 3, :]
        be = vecs[4 * i + 3:4 * i + 4, :]
        # ResidualBlock: relu(linear1) -> (dropout = id) -> linear2 -> (dropout = id)
        #                -> LayerNorm(x + residual)
        t = jnp.maximum(dense(r, w1, b1), 0.0)
        t = dense(t, w2, b2)
        r = layer_norm(t + r, g_, be)

    # final LayerNorm
    g_f = vecs[4 * num_blocks + 0:4 * num_blocks + 1, :]
    b_f = vecs[4 * num_blocks + 1:4 * num_blocks + 2, :]
    r = layer_norm(r, g_f, b_f)

    # output projection (folded into the slabs: cols/lanes >= O are zero)
    w_out = w[2 * num_blocks * H:(2 * num_blocks + 1) * H, :]   # [H, H]
    b_out = vecs[4 * num_blocks + 2:4 * num_blocks + 3, :]      # [1, H]
    y = dense(r, w_out, b_out)                                  # [TB, H]
    out_ref[...] = y[:, :O].astype(out_ref.dtype)


# ----------------------------------------------------------------------------
# Wrapper: parameter packing + pallas_call
# ----------------------------------------------------------------------------
def pack_params(params, *, num_blocks, H, O, compute_dtype=jnp.bfloat16):
    """Pack all parameters into one weight slab + one bias/LN slab (done once)."""
    assert O <= H, "output projection is folded into an [H, H] slab chunk"
    w_rows = []
    for i in range(num_blocks):
        w_rows += [params[f"w1_{i}"], params[f"w2_{i}"]]
    w_out_pad = jnp.zeros((H, H), jnp.float32).at[:, :O].set(params["out_w"])
    w_slab = jnp.concatenate(w_rows + [w_out_pad], axis=0).astype(compute_dtype)

    v_rows = []
    for i in range(num_blocks):
        v_rows += [params[f"b1_{i}"], params[f"b2_{i}"],
                   params[f"ln_g_{i}"], params[f"ln_b_{i}"]]
    v_rows += [params["ln_g_f"], params["ln_b_f"]]
    b_out_pad = jnp.zeros((H,), jnp.float32).at[:O].set(params["out_b"])
    v_rows += [b_out_pad]
    vec_slab = jnp.stack([v.reshape(H).astype(jnp.float32) for v in v_rows], axis=0)
    return w_slab, vec_slab


def residual_reward_head(x, w_slab, vec_slab, *, num_objectives, num_blocks,
                         block_b=1024):
    B, H = x.shape
    O = num_objectives

    # Batch tile: big enough to amortize the ~0.35us per-step overhead, small
    # enough that 2x double-buffered (TB, H) tiles fit comfortably in scoped
    # VMEM on every generation (incl. v7x's 64 MiB).
    TB = min(block_b, _round_up(B, 8))
    Bp = _round_up(B, TB)
    if Bp != B:
        x = jnp.pad(x, ((0, Bp - B), (0, 0)))
    grid = (Bp // TB,)

    kernel = functools.partial(residual_reward_head_kernel,
                               H=H, O=O, num_blocks=num_blocks)

    cost = pl.CostEstimate(
        flops=int(2 * Bp * H * H * (2 * num_blocks + 1)),
        transcendentals=int(Bp * (num_blocks + 1)),          # rsqrt per LayerNorm row
        bytes_accessed=int(Bp * H * 4 + Bp * O * 4
                           + w_slab.size * jnp.dtype(w_slab.dtype).itemsize
                           + vec_slab.size * 4),
    )

    out = pl.pallas_call(
        kernel,
        out_shape=jax.ShapeDtypeStruct((Bp, O), jnp.float32),
        grid=grid,
        in_specs=[
            pl.BlockSpec((TB, H), lambda i: (i, 0)),              # pipelined x tile
            pl.BlockSpec(w_slab.shape, lambda i: (0, 0)),         # resident weight slab
            pl.BlockSpec(vec_slab.shape, lambda i: (0, 0)),       # resident bias/LN slab
        ],
        out_specs=pl.BlockSpec((TB, O), lambda i: (i, 0)),
        compiler_params=pltpu.CompilerParams(
            dimension_semantics=("parallel",)),                   # megacore on v7x
        cost_estimate=cost,
    )(x, w_slab, vec_slab)
    return out[:B]


# ----------------------------------------------------------------------------
# Params + pure-JAX reference (PyTorch ResidualRewardHead semantics, eval mode)
# ----------------------------------------------------------------------------
def init_params(key, *, H, O, num_blocks):
    keys = iter(jax.random.split(key, 4 * num_blocks + 2))

    def w(shape, scale=0.1):
        return (scale * jax.random.normal(next(keys), shape)).astype(jnp.float32)

    p = {}
    for i in range(num_blocks):
        p[f"w1_{i}"], p[f"b1_{i}"] = w((H, H)), w((H,))
        p[f"w2_{i}"], p[f"b2_{i}"] = w((H, H)), w((H,))
        p[f"ln_g_{i}"] = jnp.ones((H,), jnp.float32)
        p[f"ln_b_{i}"] = jnp.zeros((H,), jnp.float32)
    p["ln_g_f"] = jnp.ones((H,), jnp.float32)
    p["ln_b_f"] = jnp.zeros((H,), jnp.float32)
    p["out_w"], p["out_b"] = w((H, O)), w((O,))
    return p


def reference(x, p, *, num_blocks):
    def dot(a, b):
        return jnp.dot(a, b, precision=jax.lax.Precision.HIGHEST)

    def ln(v, g, b):
        mu = jnp.mean(v, -1, keepdims=True)
        var = jnp.mean((v - mu) ** 2, -1, keepdims=True)
        return (v - mu) / jnp.sqrt(var + LN_EPS) * g + b

    r = x
    for i in range(num_blocks):
        t = jax.nn.relu(dot(r, p[f"w1_{i}"]) + p[f"b1_{i}"])
        t = dot(t, p[f"w2_{i}"]) + p[f"b2_{i}"]
        r = ln(t + r, p[f"ln_g_{i}"], p[f"ln_b_{i}"])
    r = ln(r, p["ln_g_f"], p["ln_b_f"])
    return dot(r, p["out_w"]) + p["out_b"]


# ----------------------------------------------------------------------------
if __name__ == "__main__":
    B, H, O, NB = 2, 32, 1, 2
    key = jax.random.PRNGKey(0)
    pkey, xkey, xkey2 = jax.random.split(key, 3)
    params = init_params(pkey, H=H, O=O, num_blocks=NB)
    x = jax.random.normal(xkey, (B, H), dtype=jnp.float32)
    ref = reference(x, params, num_blocks=NB)

    # 1) exact-math path (f32 matmuls) -> tight tolerance vs the f32 reference
    w32, v32 = pack_params(params, num_blocks=NB, H=H, O=O, compute_dtype=jnp.float32)
    out32 = jax.block_until_ready(
        residual_reward_head(x, w32, v32, num_objectives=O, num_blocks=NB))
    assert out32.shape == (B, O)
    assert jnp.allclose(out32, ref, atol=2e-5, rtol=2e-5), (out32, ref)

    # 2) fast path: bf16 MXU operands with f32 accumulation (default deployment)
    wbf, vbf = pack_params(params, num_blocks=NB, H=H, O=O, compute_dtype=jnp.bfloat16)
    outbf = jax.block_until_ready(
        residual_reward_head(x, wbf, vbf, num_objectives=O, num_blocks=NB))
    assert jnp.allclose(outbf, ref, atol=5e-2, rtol=5e-2), (outbf, ref)

    # 3) multi-tile gridded path (batch not a multiple of the tile -> pad + slice)
    xb = jax.random.normal(xkey2, (1000, H), dtype=jnp.float32)
    refb = reference(xb, params, num_blocks=NB)
    outb = jax.block_until_ready(
        residual_reward_head(xb, wbf, vbf, num_objectives=O, num_blocks=NB, block_b=256))
    assert outb.shape == (1000, O)
    assert jnp.allclose(outb, refb, atol=5e-2, rtol=5e-2)

    print("KERNEL_OK")
</pallas_src>

<mosaic_0001>
module attributes {stable_mosaic.version = 11 : i64} {
  func.func @residual_reward_head_kernel(%arg0: i32, %arg1: memref<8x32xf32, #tpu.memory_space<vmem>>, %arg2: memref<160x32xf32, #tpu.memory_space<vmem>>, %arg3: memref<11x32xf32, #tpu.memory_space<vmem>>, %arg4: memref<8x1xf32, #tpu.memory_space<vmem>>) attributes {dimension_semantics = [#tpu.dimension_semantics<parallel>], iteration_bounds = array<i64: 1>, scalar_prefetch = 0 : i64, scratch_operands = 0 : i64, tpu.core_type = #tpu.core_type<tc>, window_params = [{transform_indices = @transform_0, window_bounds = array<i64: 8, 32>}, {pipeline_mode = #tpu.pipeline_mode<synchronous>, transform_indices = @transform_1, window_bounds = array<i64: 160, 32>}, {pipeline_mode = #tpu.pipeline_mode<synchronous>, transform_indices = @transform_2, window_bounds = array<i64: 11, 32>}, {transform_indices = @transform_3, window_bounds = array<i64: 8, 1>}]} {
    %c0 = arith.constant 0 : index
    %c0_0 = arith.constant 0 : index
    %0 = vector.load %arg1[%c0, %c0_0] : memref<8x32xf32, #tpu.memory_space<vmem>>, vector<8x32xf32>
    %c0_1 = arith.constant 0 : index
    %c0_2 = arith.constant 0 : index
    %1 = vector.load %arg2[%c0_1, %c0_2] : memref<160x32xf32, #tpu.memory_space<vmem>>, vector<160x32xf32>
    %c0_3 = arith.constant 0 : index
    %c0_4 = arith.constant 0 : index
    %2 = vector.load %arg3[%c0_3, %c0_4] : memref<11x32xf32, #tpu.memory_space<vmem>>, vector<11x32xf32>
    %3 = vector.extract_strided_slice %1 {offsets = [0, 0], sizes = [32, 32], strides = [1, 1]} : vector<160x32xf32> to vector<32x32xf32>
    %4 = vector.extract_strided_slice %1 {offsets = [32, 0], sizes = [32, 32], strides = [1, 1]} : vector<160x32xf32> to vector<32x32xf32>
    %5 = vector.extract_strided_slice %2 {offsets = [0, 0], sizes = [1, 32], strides = [1, 1]} : vector<11x32xf32> to vector<1x32xf32>
    %6 = vector.extract_strided_slice %2 {offsets = [1, 0], sizes = [1, 32], strides = [1, 1]} : vector<11x32xf32> to vector<1x32xf32>
    %7 = vector.extract_strided_slice %2 {offsets = [2, 0], sizes = [1, 32], strides = [1, 1]} : vector<11x32xf32> to vector<1x32xf32>
    %8 = vector.extract_strided_slice %2 {offsets = [3, 0], sizes = [1, 32], strides = [1, 1]} : vector<11x32xf32> to vector<1x32xf32>
    %cst = arith.constant dense<0.000000e+00> : vector<8x32xf32>
    %9 = tpu.matmul %0, %3, %cst {dimension_numbers = #tpu.dot_dimension_numbers<[1], [0], [0], [1], [0, 0, 1, 1], [], []>} : vector<8x32xf32>, vector<32x32xf32>, vector<8x32xf32> -> vector<8x32xf32>
    %10 = vector.broadcast %5 : vector<1x32xf32> to vector<8x32xf32>
    %11 = arith.addf %9, %10 : vector<8x32xf32>
    %cst_5 = arith.constant 0.000000e+00 : f32
    %12 = vector.broadcast %cst_5 : f32 to vector<8x32xf32>
    %13 = arith.maximumf %11, %12 : vector<8x32xf32>
    %cst_6 = arith.constant dense<0.000000e+00> : vector<8x32xf32>
    %14 = tpu.matmul %13, %4, %cst_6 {dimension_numbers = #tpu.dot_dimension_numbers<[1], [0], [0], [1], [0, 0, 1, 1], [], []>} : vector<8x32xf32>, vector<32x32xf32>, vector<8x32xf32> -> vector<8x32xf32>
    %15 = vector.broadcast %6 : vector<1x32xf32> to vector<8x32xf32>
    %16 = arith.addf %14, %15 : vector<8x32xf32>
    %17 = arith.addf %16, %0 : vector<8x32xf32>
    %cst_7 = arith.constant dense<0.000000e+00> : vector<8xf32>
    %18 = vector.multi_reduction <add>, %17, %cst_7 [1] : vector<8x32xf32> to vector<8xf32>
    %19 = vector.shape_cast %18 : vector<8xf32> to vector<8x1xf32>
    %cst_8 = arith.constant 3.200000e+01 : f32
    %20 = vector.broadcast %cst_8 : f32 to vector<8x1xf32>
    %21 = arith.divf %19, %20 : vector<8x1xf32>
    %22 = vector.broadcast %21 : vector<8x1xf32> to vector<8x32xf32>
    %23 = arith.subf %17, %22 : vector<8x32xf32>
    %24 = arith.mulf %23, %23 : vector<8x32xf32>
    %cst_9 = arith.constant dense<0.000000e+00> : vector<8xf32>
    %25 = vector.multi_reduction <add>, %24, %cst_9 [1] : vector<8x32xf32> to vector<8xf32>
    %26 = vector.shape_cast %25 : vector<8xf32> to vector<8x1xf32>
    %cst_10 = arith.constant 3.200000e+01 : f32
    %27 = vector.broadcast %cst_10 : f32 to vector<8x1xf32>
    %28 = arith.divf %26, %27 : vector<8x1xf32>
    %29 = vector.broadcast %21 : vector<8x1xf32> to vector<8x32xf32>
    %30 = arith.subf %17, %29 : vector<8x32xf32>
    %cst_11 = arith.constant 9.99999974E-6 : f32
    %31 = vector.broadcast %cst_11 : f32 to vector<8x1xf32>
    %32 = arith.addf %28, %31 : vector<8x1xf32>
    %33 = math.rsqrt %32 : vector<8x1xf32>
    %34 = vector.broadcast %33 : vector<8x1xf32> to vector<8x32xf32>
    %35 = arith.mulf %30, %34 : vector<8x32xf32>
    %36 = vector.broadcast %7 : vector<1x32xf32> to vector<8x32xf32>
    %37 = arith.mulf %35, %36 : vector<8x32xf32>
    %38 = vector.broadcast %8 : vector<1x32xf32> to vector<8x32xf32>
    %39 = arith.addf %37, %38 : vector<8x32xf32>
    %40 = vector.extract_strided_slice %1 {offsets = [64, 0], sizes = [32, 32], strides = [1, 1]} : vector<160x32xf32> to vector<32x32xf32>
    %41 = vector.extract_strided_slice %1 {offsets = [96, 0], sizes = [32, 32], strides = [1, 1]} : vector<160x32xf32> to vector<32x32xf32>
    %42 = vector.extract_strided_slice %2 {offsets = [4, 0], sizes = [1, 32], strides = [1, 1]} : vector<11x32xf32> to vector<1x32xf32>
    %43 = vector.extract_strided_slice %2 {offsets = [5, 0], sizes = [1, 32], strides = [1, 1]} : vector<11x32xf32> to vector<1x32xf32>
    %44 = vector.extract_strided_slice %2 {offsets = [6, 0], sizes = [1, 32], strides = [1, 1]} : vector<11x32xf32> to vector<1x32xf32>
    %45 = vector.extract_strided_slice %2 {offsets = [7, 0], sizes = [1, 32], strides = [1, 1]} : vector<11x32xf32> to vector<1x32xf32>
    %cst_12 = arith.constant dense<0.000000e+00> : vector<8x32xf32>
    %46 = tpu.matmul %39, %40, %cst_12 {dimension_numbers = #tpu.dot_dimension_numbers<[1], [0], [0], [1], [0, 0, 1, 1], [], []>} : vector<8x32xf32>, vector<32x32xf32>, vector<8x32xf32> -> vector<8x32xf32>
    %47 = vector.broadcast %42 : vector<1x32xf32> to vector<8x32xf32>
    %48 = arith.addf %46, %47 : vector<8x32xf32>
    %cst_13 = arith.constant 0.000000e+00 : f32
    %49 = vector.broadcast %cst_13 : f32 to vector<8x32xf32>
    %50 = arith.maximumf %48, %49 : vector<8x32xf32>
    %cst_14 = arith.constant dense<0.000000e+00> : vector<8x32xf32>
    %51 = tpu.matmul %50, %41, %cst_14 {dimension_numbers = #tpu.dot_dimension_numbers<[1], [0], [0], [1], [0, 0, 1, 1], [], []>} : vector<8x32xf32>, vector<32x32xf32>, vector<8x32xf32> -> vector<8x32xf32>
    %52 = vector.broadcast %43 : vector<1x32xf32> to vector<8x32xf32>
    %53 = arith.addf %51, %52 : vector<8x32xf32>
    %54 = arith.addf %53, %39 : vector<8x32xf32>
    %cst_15 = arith.constant dense<0.000000e+00> : vector<8xf32>
    %55 = vector.multi_reduction <add>, %54, %cst_15 [1] : vector<8x32xf32> to vector<8xf32>
    %56 = vector.shape_cast %55 : vector<8xf32> to vector<8x1xf32>
    %cst_16 = arith.constant 3.200000e+01 : f32
    %57 = vector.broadcast %cst_16 : f32 to vector<8x1xf32>
    %58 = arith.divf %56, %57 : vector<8x1xf32>
    %59 = vector.broadcast %58 : vector<8x1xf32> to vector<8x32xf32>
    %60 = arith.subf %54, %59 : vector<8x32xf32>
    %61 = arith.mulf %60, %60 : vector<8x32xf32>
    %cst_17 = arith.constant dense<0.000000e+00> : vector<8xf32>
    %62 = vector.multi_reduction <add>, %61, %cst_17 [1] : vector<8x32xf32> to vector<8xf32>
    %63 = vector.shape_cast %62 : vector<8xf32> to vector<8x1xf32>
    %cst_18 = arith.constant 3.200000e+01 : f32
    %64 = vector.broadcast %cst_18 : f32 to vector<8x1xf32>
    %65 = arith.divf %63, %64 : vector<8x1xf32>
    %66 = vector.broadcast %58 : vector<8x1xf32> to vector<8x32xf32>
    %67 = arith.subf %54, %66 : vector<8x32xf32>
    %cst_19 = arith.constant 9.99999974E-6 : f32
    %68 = vector.broadcast %cst_19 : f32 to vector<8x1xf32>
    %69 = arith.addf %65, %68 : vector<8x1xf32>
    %70 = math.rsqrt %69 : vector<8x1xf32>
    %71 = vector.broadcast %70 : vector<8x1xf32> to vector<8x32xf32>
    %72 = arith.mulf %67, %71 : vector<8x32xf32>
    %73 = vector.broadcast %44 : vector<1x32xf32> to vector<8x32xf32>
    %74 = arith.mulf %72, %73 : vector<8x32xf32>
    %75 = vector.broadcast %45 : vector<1x32xf32> to vector<8x32xf32>
    %76 = arith.addf %74, %75 : vector<8x32xf32>
    %77 = vector.extract_strided_slice %2 {offsets = [8, 0], sizes = [1, 32], strides = [1, 1]} : vector<11x32xf32> to vector<1x32xf32>
    %78 = vector.extract_strided_slice %2 {offsets = [9, 0], sizes = [1, 32], strides = [1, 1]} : vector<11x32xf32> to vector<1x32xf32>
    %cst_20 = arith.constant dense<0.000000e+00> : vector<8xf32>
    %79 = vector.multi_reduction <add>, %76, %cst_20 [1] : vector<8x32xf32> to vector<8xf32>
    %80 = vector.shape_cast %79 : vector<8xf32> to vector<8x1xf32>
    %cst_21 = arith.constant 3.200000e+01 : f32
    %81 = vector.broadcast %cst_21 : f32 to vector<8x1xf32>
    %82 = arith.divf %80, %81 : vector<8x1xf32>
    %83 = vector.broadcast %82 : vector<8x1xf32> to vector<8x32xf32>
    %84 = arith.subf %76, %83 : vector<8x32xf32>
    %85 = arith.mulf %84, %84 : vector<8x32xf32>
    %cst_22 = arith.constant dense<0.000000e+00> : vector<8xf32>
    %86 = vector.multi_reduction <add>, %85, %cst_22 [1] : vector<8x32xf32> to vector<8xf32>
    %87 = vector.shape_cast %86 : vector<8xf32> to vector<8x1xf32>
    %cst_23 = arith.constant 3.200000e+01 : f32
    %88 = vector.broadcast %cst_23 : f32 to vector<8x1xf32>
    %89 = arith.divf %87, %88 : vector<8x1xf32>
    %90 = vector.broadcast %82 : vector<8x1xf32> to vector<8x32xf32>
    %91 = arith.subf %76, %90 : vector<8x32xf32>
    %cst_24 = arith.constant 9.99999974E-6 : f32
    %92 = vector.broadcast %cst_24 : f32 to vector<8x1xf32>
    %93 = arith.addf %89, %92 : vector<8x1xf32>
    %94 = math.rsqrt %93 : vector<8x1xf32>
    %95 = vector.broadcast %94 : vector<8x1xf32> to vector<8x32xf32>
    %96 = arith.mulf %91, %95 : vector<8x32xf32>
    %97 = vector.broadcast %77 : vector<1x32xf32> to vector<8x32xf32>
    %98 = arith.mulf %96, %97 : vector<8x32xf32>
    %99 = vector.broadcast %78 : vector<1x32xf32> to vector<8x32xf32>
    %100 = arith.addf %98, %99 : vector<8x32xf32>
    %101 = vector.extract_strided_slice %1 {offsets = [128, 0], sizes = [32, 32], strides = [1, 1]} : vector<160x32xf32> to vector<32x32xf32>
    %102 = vector.extract_strided_slice %2 {offsets = [10, 0], sizes = [1, 32], strides = [1, 1]} : vector<11x32xf32> to vector<1x32xf32>
    %cst_25 = arith.constant dense<0.000000e+00> : vector<8x32xf32>
    %103 = tpu.matmul %100, %101, %cst_25 {dimension_numbers = #tpu.dot_dimension_numbers<[1], [0], [0], [1], [0, 0, 1, 1], [], []>} : vector<8x32xf32>, vector<32x32xf32>, vector<8x32xf32> -> vector<8x32xf32>
    %104 = vector.broadcast %102 : vector<1x32xf32> to vector<8x32xf32>
    %105 = arith.addf %103, %104 : vector<8x32xf32>
    %106 = vector.extract_strided_slice %105 {offsets = [0, 0], sizes = [8, 1], strides = [1, 1]} : vector<8x32xf32> to vector<8x1xf32>
    %c0_26 = arith.constant 0 : index
    %c0_27 = arith.constant 0 : index
    %107 = vector.load %arg4[%c0_26, %c0_27] : memref<8x1xf32, #tpu.memory_space<vmem>>, vector<8x1xf32>
    tpu.vector_store %arg4[%c0_26, %c0_27], %106 {strides = array<i32>} : memref<8x1xf32, #tpu.memory_space<vmem>>, vector<8x1xf32>,
    return
  }
  func.func @transform_0(%arg0: i32) -> (i32, i32) {
    %c0_i32 = arith.constant 0 : i32
    %c0_i32_0 = arith.constant 0 : i32
    return %arg0, %c0_i32 : i32, i32
  }
  func.func @transform_1(%arg0: i32) -> (i32, i32) {
    %c0_i32 = arith.constant 0 : i32
    %c0_i32_0 = arith.constant 0 : i32
    %c0_i32_1 = arith.constant 0 : i32
    return %c0_i32, %c0_i32_0 : i32, i32
  }
  func.func @transform_2(%arg0: i32) -> (i32, i32) {
    %c0_i32 = arith.constant 0 : i32
    %c0_i32_0 = arith.constant 0 : i32
    %c0_i32_1 = arith.constant 0 : i32
    return %c0_i32, %c0_i32_0 : i32, i32
  }
  func.func @transform_3(%arg0: i32) -> (i32, i32) {
    %c0_i32 = arith.constant 0 : i32
    %c0_i32_0 = arith.constant 0 : i32
    return %arg0, %c0_i32 : i32, i32
  }
}

</mosaic_0001>

<llo_original>
// kernel: tpu_custom_call.1
$region0: #{tpu_custom_call.1}
  #allocation0 [shape = 'u32[]', space=smem, size = 0x4, offset = 0x4, fixed_abs, tag = 'smem constant byte address 0x4 - core index']
  #allocation1 [shape = 'u32[144,128]{1,0:T(1,128)}', space=vmem, size = 0x12000, scoped, tag = 'internal scratch']
  %s0 = inlined_call_operand.vmem [shape: f32[8,32], index: 0, kind: input, shape index: {}]
  %s1 = inlined_call_operand.vmem [shape: f32[160,32], index: 1, kind: input, shape index: {}]
  %s2 = inlined_call_operand.vmem [shape: f32[11,32], index: 2, kind: input, shape index: {}]
  %s3 = inlined_call_operand.vmem [shape: f32[8,1], index: 3, kind: output, shape index: {}]
  %s4 = sld [smem:[#allocation0]]
  $region22: #{tpu_custom_call.1} parent=0
    _
  %s6 = ssub.s32 1, %s4
  %s7 = scalar_select 0, %s6, %s4
  // Predicated region
  $region2: #{tpu_custom_call.1} parent=0 // pred_check
    _
  $region3: #{tpu_custom_call.1} parent=0 // pred_check_branch
    %9 = sbr.rel (0) target = $region5
  $region4: #{tpu_custom_call.1} parent=0 // pred_region
    _
  $region5: #{tpu_custom_call.1} parent=0 // pred_fallthru
    _
  // Predicated region
  $region6: #{tpu_custom_call.1} parent=0 // pred_check
    _
  $region7: #{tpu_custom_call.1} parent=0 // pred_check_branch
    %11 = sbr.rel (0) target = $region9
  $region8: #{tpu_custom_call.1} parent=0 // pred_region
    _
  $region9: #{tpu_custom_call.1} parent=0 // pred_fallthru
    _
  // Predicated region
  $region10: #{tpu_custom_call.1} parent=0 // pred_check
    _
  $region11: #{tpu_custom_call.1} parent=0 // pred_check_branch
    %13 = sbr.rel (0) target = $region13
  $region12: #{tpu_custom_call.1} parent=0 // pred_region
    _
  $region13: #{tpu_custom_call.1} parent=0 // pred_fallthru
    _
  %v14 = vld [vmem:[%s0] sm:$0xff]
  %v15 = vld [vmem:[%s1] sm:$0xff]
  %v16 = vld [vmem:[%s1 + $0x8] sm:$0xff]
  %v17 = vld [vmem:[%s1 + $0x10] sm:$0xff]
  %v18 = vld [vmem:[%s1 + $0x18] sm:$0xff]
  %v19 = vld [vmem:[%s1 + $0x20] sm:$0xff]
  %v20 = vld [vmem:[%s1 + $0x28] sm:$0xff]
  %v21 = vld [vmem:[%s1 + $0x30] sm:$0xff]
  %v22 = vld [vmem:[%s1 + $0x38] sm:$0xff]
  %v23 = vld [vmem:[%s1 + $0x40] sm:$0xff]
  %v24 = vld [vmem:[%s1 + $0x48] sm:$0xff]
  %v25 = vld [vmem:[%s1 + $0x50] sm:$0xff]
  %v26 = vld [vmem:[%s1 + $0x58] sm:$0xff]
  %v27 = vld [vmem:[%s1 + $0x60] sm:$0xff]
  %v28 = vld [vmem:[%s1 + $0x68] sm:$0xff]
  %v29 = vld [vmem:[%s1 + $0x70] sm:$0xff]
  %v30 = vld [vmem:[%s1 + $0x78] sm:$0xff]
  %v31 = vld [vmem:[%s1 + $0x80] sm:$0xff]
  %v32 = vld [vmem:[%s1 + $0x88] sm:$0xff]
  %v33 = vld [vmem:[%s1 + $0x90] sm:$0xff]
  %v34 = vld [vmem:[%s1 + $0x98] sm:$0xff]
  %v35 = vld [vmem:[%s2] sm:$0xff]
  %v36 = vld [vmem:[%s2 + $0x8] sm:$0x7]
  %v37 = vlaneseq
  %v38 = vshrl.u32 %v37, 7
  %v39 = vsub.s32 0, %v38
  %v40 = vrot.slane %v35, %v39
  %vm41 = vcmask 261120
  %v43 = vsel %vm41, %v14, 0
  %45 = vmatprep.subr.mxu0 0.0
  %46 = vmatpush1.msra.mxu0 %v15
  %47 = vmatprep.subr.mxu0 0.0
  %48 = vmatpush1.msra.mxu0 %v16
  %49 = vmatprep.subr.mxu0 0.0
  %50 = vmatpush1.msra.mxu0 %v17
  %51 = vmatprep.subr.mxu0 0.0
  %52 = vmatpush1.msra.mxu0 %v18
  %53 = vmatprep.subr.mxu0 0.0
  %54 = vmatpush1.msra.mxu0 0.0
  %55 = vmatprep.subr.mxu0 0.0
  %56 = vmatpush1.msra.mxu0 0.0
  %57 = vmatprep.subr.mxu0 0.0
  %58 = vmatpush1.msra.mxu0 0.0
  %59 = vmatprep.subr.mxu0 0.0
  %60 = vmatpush1.msra.mxu0 0.0
  %61 = vmatprep.subr.mxu0 0.0
  %62 = vmatpush1.msra.mxu0 0.0
  %63 = vmatprep.subr.mxu0 0.0
  %64 = vmatpush1.msra.mxu0 0.0
  %65 = vmatprep.subr.mxu0 0.0
  %66 = vmatpush1.msra.mxu0 0.0
  %67 = vmatprep.subr.mxu0 0.0
  %68 = vmatpush1.msra.mxu0 0.0
  %69 = vmatprep.subr.mxu0 0.0
  %70 = vmatpush1.msra.mxu0 0.0
  %71 = vmatprep.subr.mxu0 0.0
  %72 = vmatpush1.msra.mxu0 0.0
  %73 = vmatprep.subr.mxu0 0.0
  %74 = vmatpush1.msra.mxu0 0.0
  %75 = vmatprep.subr.mxu0 0.0
  %76 = vmatpush1.msra.mxu0 0.0
  %77 = vmatprep.subr.mxu0 0.0
  %78 = vmatpush1.msra.mxu0 0.0
  %79 = vmatprep.subr.mxu0 0.0
  %80 = vmatpush1.msra.mxu0 0.0
  %81 = vmatprep.subr.mxu0 0.0
  %82 = vmatpush1.msra.mxu0 0.0
  %83 = vmatprep.subr.mxu0 0.0
  %84 = vmatpush1.msra.mxu0 0.0
  %85 = vmatprep.subr.mxu0 0.0
  %86 = vmatpush1.msra.mxu0 0.0
  %87 = vmatprep.subr.mxu0 0.0
  %88 = vmatpush1.msra.mxu0 0.0
  %89 = vmatprep.subr.mxu0 0.0
  %90 = vmatpush1.msra.mxu0 0.0
  %91 = vmatprep.subr.mxu0 0.0
  %92 = vmatpush1.msra.mxu0 0.0
  %93 = vmatprep.subr.mxu0 0.0
  %94 = vmatpush1.msra.mxu0 0.0
  %95 = vmatprep.subr.mxu0 0.0
  %96 = vmatpush1.msra.mxu0 0.0
  %97 = vmatprep.subr.mxu0 0.0
  %98 = vmatpush1.msra.mxu0 0.0
  %99 = vmatprep.subr.mxu0 0.0
  %100 = vmatpush1.msra.mxu0 0.0
  %101 = vmatprep.subr.mxu0 0.0
  %102 = vmatpush1.msra.mxu0 0.0
  %103 = vmatprep.subr.mxu0 0.0
  %104 = vmatpush1.msra.mxu0 0.0
  %105 = vmatprep.subr.mxu0 0.0
  %106 = vmatpush1.msra.mxu0 0.0
  %107 = vmatprep.subr.mxu0 0.0
  %108 = vmatpush1.msra.mxu0 0.0
  %109 = vmatprep.mubr.f32.mxu0 0.0
  %110 = vmatmul.mubr.f32.gmra.mrb[0].mxu0 %v43
  %v111 = vpop.f32.mrb[0].mxu0
  %v112 = vadd.f32 %v40, %v111
  %v113 = vpop.f32.mrb[0].mxu0
  %114 = vdwg.mxu0
  %v115 = vmax.f32 %v112, 0.0
  %v116 = vlaneseq
  %v117 = vshrl.u32 %v116, 7
  %v118 = vsub.s32 1, %v117
  %v119 = vrot.slane %v35, %v118
  %v121 = vsel %vm41, %v115, 0
  %123 = vmatprep.subr.mxu0 0.0
  %124 = vmatpush1.msra.mxu0 %v19
  %125 = vmatprep.subr.mxu0 0.0
  %126 = vmatpush1.msra.mxu0 %v20
  %127 = vmatprep.subr.mxu0 0.0
  %128 = vmatpush1.msra.mxu0 %v21
  %129 = vmatprep.subr.mxu0 0.0
  %130 = vmatpush1.msra.mxu0 %v22
  %131 = vmatprep.subr.mxu0 0.0
  %132 = vmatpush1.msra.mxu0 0.0
  %133 = vmatprep.subr.mxu0 0.0
  %134 = vmatpush1.msra.mxu0 0.0
  %135 = vmatprep.subr.mxu0 0.0
  %136 = vmatpush1.msra.mxu0 0.0
  %137 = vmatprep.subr.mxu0 0.0
  %138 = vmatpush1.msra.mxu0 0.0
  %139 = vmatprep.subr.mxu0 0.0
  %140 = vmatpush1.msra.mxu0 0.0
  %141 = vmatprep.subr.mxu0 0.0
  %142 = vmatpush1.msra.mxu0 0.0
  %143 = vmatprep.subr.mxu0 0.0
  %144 = vmatpush1.msra.mxu0 0.0
  %145 = vmatprep.subr.mxu0 0.0
  %146 = vmatpush1.msra.mxu0 0.0
  %147 = vmatprep.subr.mxu0 0.0
  %148 = vmatpush1.msra.mxu0 0.0
  %149 = vmatprep.subr.mxu0 0.0
  %150 = vmatpush1.msra.mxu0 0.0
  %151 = vmatprep.subr.mxu0 0.0
  %152 = vmatpush1.msra.mxu0 0.0
  %153 = vmatprep.subr.mxu0 0.0
  %154 = vmatpush1.msra.mxu0 0.0
  %155 = vmatprep.subr.mxu0 0.0
  %156 = vmatpush1.msra.mxu0 0.0
  %157 = vmatprep.subr.mxu0 0.0
  %158 = vmatpush1.msra.mxu0 0.0
  %159 = vmatprep.subr.mxu0 0.0
  %160 = vmatpush1.msra.mxu0 0.0
  %161 = vmatprep.subr.mxu0 0.0
  %162 = vmatpush1.msra.mxu0 0.0
  %163 = vmatprep.subr.mxu0 0.0
  %164 = vmatpush1.msra.mxu0 0.0
  %165 = vmatprep.subr.mxu0 0.0
  %166 = vmatpush1.msra.mxu0 0.0
  %167 = vmatprep.subr.mxu0 0.0
  %168 = vmatpush1.msra.mxu0 0.0
  %169 = vmatprep.subr.mxu0 0.0
  %170 = vmatpush1.msra.mxu0 0.0
  %171 = vmatprep.subr.mxu0 0.0
  %172 = vmatpush1.msra.mxu0 0.0
  %173 = vmatprep.subr.mxu0 0.0
  %174 = vmatpush1.msra.mxu0 0.0
  %175 = vmatprep.subr.mxu0 0.0
  %176 = vmatpush1.msra.mxu0 0.0
  %177 = vmatprep.subr.mxu0 0.0
  %178 = vmatpush1.msra.mxu0 0.0
  %179 = vmatprep.subr.mxu0 0.0
  %180 = vmatpush1.msra.mxu0 0.0
  %181 = vmatprep.subr.mxu0 0.0
  %182 = vmatpush1.msra.mxu0 0.0
  %183 = vmatprep.subr.mxu0 0.0
  %184 = vmatpush1.msra.mxu0 0.0
  %185 = vmatprep.subr.mxu0 0.0
  %186 = vmatpush1.msra.mxu0 0.0
  %187 = vmatprep.mubr.f32.mxu0 0.0
  %188 = vmatmul.mubr.f32.gmra.mrb[0].mxu0 %v121
  %v189 = vpop.f32.mrb[0].mxu0
  %v190 = vadd.f32 %v119, %v189
  %v191 = vpop.f32.mrb[0].mxu0
  %192 = vdwg.mxu0
  %v193 = vadd.f32 %v190, %v14
  %v194 = vsel %vm41, %v193, 0.0
  %195 = vadd.xlane.f32.xlu0 %v194
  %v196 = vpop.xlane.xlu0 %195
  %v197 = vrcp.pop 32.0
  %v198 = vmul.f32 %v196, %v197
  %v199 = vsub.f32 %v193, %v198
  %v200 = vmul.f32 %v199, %v199
  %v201 = vsel %vm41, %v200, 0.0
  %202 = vadd.xlane.f32.xlu0 %v201
  %v203 = vpop.xlane.xlu0 %202
  %v204 = vmul.f32 %v203, %v197
  %v205 = vadd.f32 %v204, 1e-05
  %v206 = vrsqrt.pop %v205
  %v207 = vmul.f32 %v199, %v206
  %v208 = vlaneseq
  %v209 = vshrl.u32 %v208, 7
  %v210 = vsub.s32 2, %v209
  %v211 = vrot.slane %v35, %v210
  %v212 = vmul.f32 %v207, %v211
  %v213 = vlaneseq
  %v214 = vshrl.u32 %v213, 7
  %v215 = vsub.s32 3, %v214
  %v216 = vrot.slane %v35, %v215
  %v217 = vadd.f32 %v212, %v216
  %v218 = vlaneseq
  %v219 = vshrl.u32 %v218, 7
  %v220 = vsub.s32 4, %v219
  %v221 = vrot.slane %v35, %v220
  %v223 = vsel %vm41, %v217, 0
  %225 = vmatprep.subr.mxu0 0.0
  %226 = vmatpush1.msra.mxu0 %v23
  %227 = vmatprep.subr.mxu0 0.0
  %228 = vmatpush1.msra.mxu0 %v24
  %229 = vmatprep.subr.mxu0 0.0
  %230 = vmatpush1.msra.mxu0 %v25
  %231 = vmatprep.subr.mxu0 0.0
  %232 = vmatpush1.msra.mxu0 %v26
  %233 = vmatprep.subr.mxu0 0.0
  %234 = vmatpush1.msra.mxu0 0.0
  %235 = vmatprep.subr.mxu0 0.0
  %236 = vmatpush1.msra.mxu0 0.0
  %237 = vmatprep.subr.mxu0 0.0
  %238 = vmatpush1.msra.mxu0 0.0
  %239 = vmatprep.subr.mxu0 0.0
  %240 = vmatpush1.msra.mxu0 0.0
  %241 = vmatprep.subr.mxu0 0.0
  %242 = vmatpush1.msra.mxu0 0.0
  %243 = vmatprep.subr.mxu0 0.0
  %244 = vmatpush1.msra.mxu0 0.0
  %245 = vmatprep.subr.mxu0 0.0
  %246 = vmatpush1.msra.mxu0 0.0
  %247 = vmatprep.subr.mxu0 0.0
  %248 = vmatpush1.msra.mxu0 0.0
  %249 = vmatprep.subr.mxu0 0.0
  %250 = vmatpush1.msra.mxu0 0.0
  %251 = vmatprep.subr.mxu0 0.0
  %252 = vmatpush1.msra.mxu0 0.0
  %253 = vmatprep.subr.mxu0 0.0
  %254 = vmatpush1.msra.mxu0 0.0
  %255 = vmatprep.subr.mxu0 0.0
  %256 = vmatpush1.msra.mxu0 0.0
  %257 = vmatprep.subr.mxu0 0.0
  %258 = vmatpush1.msra.mxu0 0.0
  %259 = vmatprep.subr.mxu0 0.0
  %260 = vmatpush1.msra.mxu0 0.0
  %261 = vmatprep.subr.mxu0 0.0
  %262 = vmatpush1.msra.mxu0 0.0
  %263 = vmatprep.subr.mxu0 0.0
  %264 = vmatpush1.msra.mxu0 0.0
  %265 = vmatprep.subr.mxu0 0.0
  %266 = vmatpush1.msra.mxu0 0.0
  %267 = vmatprep.subr.mxu0 0.0
  %268 = vmatpush1.msra.mxu0 0.0
  %269 = vmatprep.subr.mxu0 0.0
  %270 = vmatpush1.msra.mxu0 0.0
  %271 = vmatprep.subr.mxu0 0.0
  %272 = vmatpush1.msra.mxu0 0.0
  %273 = vmatprep.subr.mxu0 0.0
  %274 = vmatpush1.msra.mxu0 0.0
  %275 = vmatprep.subr.mxu0 0.0
  %276 = vmatpush1.msra.mxu0 0.0
  %277 = vmatprep.subr.mxu0 0.0
  %278 = vmatpush1.msra.mxu0 0.0
  %279 = vmatprep.subr.mxu0 0.0
  %280 = vmatpush1.msra.mxu0 0.0
  %281 = vmatprep.subr.mxu0 0.0
  %282 = vmatpush1.msra.mxu0 0.0
  %283 = vmatprep.subr.mxu0 0.0
  %284 = vmatpush1.msra.mxu0 0.0
  %285 = vmatprep.subr.mxu0 0.0
  %286 = vmatpush1.msra.mxu0 0.0
  %287 = vmatprep.subr.mxu0 0.0
  %288 = vmatpush1.msra.mxu0 0.0
  %289 = vmatprep.mubr.f32.mxu0 0.0
  %290 = vmatmul.mubr.f32.gmra.mrb[0].mxu0 %v223
  %v291 = vpop.f32.mrb[0].mxu0
  %v292 = vadd.f32 %v221, %v291
  %v293 = vpop.f32.mrb[0].mxu0
  %294 = vdwg.mxu0
  %v295 = vmax.f32 %v292, 0.0
  %v296 = vlaneseq
  %v297 = vshrl.u32 %v296, 7
  %v298 = vsub.s32 5, %v297
  %v299 = vrot.slane %v35, %v298
  %v301 = vsel %vm41, %v295, 0
  %303 = vmatprep.subr.mxu0 0.0
  %304 = vmatpush1.msra.mxu0 %v27
  %305 = vmatprep.subr.mxu0 0.0
  %306 = vmatpush1.msra.mxu0 %v28
  %307 = vmatprep.subr.mxu0 0.0
  %308 = vmatpush1.msra.mxu0 %v29
  %309 = vmatprep.subr.mxu0 0.0
  %310 = vmatpush1.msra.mxu0 %v30
  %311 = vmatprep.subr.mxu0 0.0
  %312 = vmatpush1.msra.mxu0 0.0
  %313 = vmatprep.subr.mxu0 0.0
  %314 = vmatpush1.msra.mxu0 0.0
  %315 = vmatprep.subr.mxu0 0.0
  %316 = vmatpush1.msra.mxu0 0.0
  %317 = vmatprep.subr.mxu0 0.0
  %318 = vmatpush1.msra.mxu0 0.0
  %319 = vmatprep.subr.mxu0 0.0
  %320 = vmatpush1.msra.mxu0 0.0
  %321 = vmatprep.subr.mxu0 0.0
  %322 = vmatpush1.msra.mxu0 0.0
  %323 = vmatprep.subr.mxu0 0.0
  %324 = vmatpush1.msra.mxu0 0.0
  %325 = vmatprep.subr.mxu0 0.0
  %326 = vmatpush1.msra.mxu0 0.0
  %327 = vmatprep.subr.mxu0 0.0
  %328 = vmatpush1.msra.mxu0 0.0
  %329 = vmatprep.subr.mxu0 0.0
  %330 = vmatpush1.msra.mxu0 0.0
  %331 = vmatprep.subr.mxu0 0.0
  %332 = vmatpush1.msra.mxu0 0.0
  %333 = vmatprep.subr.mxu0 0.0
  %334 = vmatpush1.msra.mxu0 0.0
  %335 = vmatprep.subr.mxu0 0.0
  %336 = vmatpush1.msra.mxu0 0.0
  %337 = vmatprep.subr.mxu0 0.0
  %338 = vmatpush1.msra.mxu0 0.0
  %339 = vmatprep.subr.mxu0 0.0
  %340 = vmatpush1.msra.mxu0 0.0
  %341 = vmatprep.subr.mxu0 0.0
  %342 = vmatpush1.msra.mxu0 0.0
  %343 = vmatprep.subr.mxu0 0.0
  %344 = vmatpush1.msra.mxu0 0.0
  %345 = vmatprep.subr.mxu0 0.0
  %346 = vmatpush1.msra.mxu0 0.0
  %347 = vmatprep.subr.mxu0 0.0
  %348 = vmatpush1.msra.mxu0 0.0
  %349 = vmatprep.subr.mxu0 0.0
  %350 = vmatpush1.msra.mxu0 0.0
  %351 = vmatprep.subr.mxu0 0.0
  %352 = vmatpush1.msra.mxu0 0.0
  %353 = vmatprep.subr.mxu0 0.0
  %354 = vmatpush1.msra.mxu0 0.0
  %355 = vmatprep.subr.mxu0 0.0
  %356 = vmatpush1.msra.mxu0 0.0
  %357 = vmatprep.subr.mxu0 0.0
  %358 = vmatpush1.msra.mxu0 0.0
  %359 = vmatprep.subr.mxu0 0.0
  %360 = vmatpush1.msra.mxu0 0.0
  %361 = vmatprep.subr.mxu0 0.0
  %362 = vmatpush1.msra.mxu0 0.0
  %363 = vmatprep.subr.mxu0 0.0
  %364 = vmatpush1.msra.mxu0 0.0
  %365 = vmatprep.subr.mxu0 0.0
  %366 = vmatpush1.msra.mxu0 0.0
  %367 = vmatprep.mubr.f32.mxu0 0.0
  %368 = vmatmul.mubr.f32.gmra.mrb[0].mxu0 %v301
  %v369 = vpop.f32.mrb[0].mxu0
  %v370 = vadd.f32 %v299, %v369
  %v371 = vpop.f32.mrb[0].mxu0
  %372 = vdwg.mxu0
  %v373 = vadd.f32 %v370, %v217
  %v374 = vsel %vm41, %v373, 0.0
  %375 = vadd.xlane.f32.xlu0 %v374
  %v376 = vpop.xlane.xlu0 %375
  %v377 = vmul.f32 %v376, %v197
  %v378 = vsub.f32 %v373, %v377
  %v379 = vmul.f32 %v378, %v378
  %v380 = vsel %vm41, %v379, 0.0
  %381 = vadd.xlane.f32.xlu0 %v380
  %v382 = vpop.xlane.xlu0 %381
  %v383 = vmul.f32 %v382, %v197
  %v384 = vadd.f32 %v383, 1e-05
  %v385 = vrsqrt.pop %v384
  %v386 = vmul.f32 %v378, %v385
  %v387 = vlaneseq
  %v388 = vshrl.u32 %v387, 7
  %v389 = vsub.s32 6, %v388
  %v390 = vrot.slane %v35, %v389
  %v391 = vmul.f32 %v386, %v390
  %v392 = vlaneseq
  %v393 = vshrl.u32 %v392, 7
  %v394 = vsub.s32 7, %v393
  %v395 = vrot.slane %v35, %v394
  %v396 = vadd.f32 %v391, %v395
  %v397 = vsel %vm41, %v396, 0.0
  %398 = vadd.xlane.f32.xlu0 %v397
  %v399 = vpop.xlane.xlu0 %398
  %v400 = vmul.f32 %v399, %v197
  %v401 = vsub.f32 %v396, %v400
  %v402 = vmul.f32 %v401, %v401
  %v403 = vsel %vm41, %v402, 0.0
  %404 = vadd.xlane.f32.xlu0 %v403
  %v405 = vpop.xlane.xlu0 %404
  %v406 = vmul.f32 %v405, %v197
  %v407 = vadd.f32 %v406, 1e-05
  %v408 = vrsqrt.pop %v407
  %v409 = vmul.f32 %v401, %v408
  %v410 = vlaneseq
  %v411 = vshrl.u32 %v410, 7
  %v412 = vsub.s32 0, %v411
  %v413 = vrot.slane %v36, %v412
  %v414 = vmul.f32 %v409, %v413
  %v415 = vlaneseq
  %v416 = vshrl.u32 %v415, 7
  %v417 = vsub.s32 1, %v416
  %v418 = vrot.slane %v36, %v417
  %v419 = vadd.f32 %v414, %v418
  %v420 = vlaneseq
  %v421 = vshrl.u32 %v420, 7
  %v422 = vsub.s32 2, %v421
  %v423 = vrot.slane %v36, %v422
  %v425 = vsel %vm41, %v419, 0
  %427 = vmatprep.subr.mxu0 0.0
  %428 = vmatpush1.msra.mxu0 %v31
  %429 = vmatprep.subr.mxu0 0.0
  %430 = vmatpush1.msra.mxu0 %v32
  %431 = vmatprep.subr.mxu0 0.0
  %432 = vmatpush1.msra.mxu0 %v33
  %433 = vmatprep.subr.mxu0 0.0
  %434 = vmatpush1.msra.mxu0 %v34
  %435 = vmatprep.subr.mxu0 0.0
  %436 = vmatpush1.msra.mxu0 0.0
  %437 = vmatprep.subr.mxu0 0.0
  %438 = vmatpush1.msra.mxu0 0.0
  %439 = vmatprep.subr.mxu0 0.0
  %440 = vmatpush1.msra.mxu0 0.0
  %441 = vmatprep.subr.mxu0 0.0
  %442 = vmatpush1.msra.mxu0 0.0
  %443 = vmatprep.subr.mxu0 0.0
  %444 = vmatpush1.msra.mxu0 0.0
  %445 = vmatprep.subr.mxu0 0.0
  %446 = vmatpush1.msra.mxu0 0.0
  %447 = vmatprep.subr.mxu0 0.0
  %448 = vmatpush1.msra.mxu0 0.0
  %449 = vmatprep.subr.mxu0 0.0
  %450 = vmatpush1.msra.mxu0 0.0
  %451 = vmatprep.subr.mxu0 0.0
  %452 = vmatpush1.msra.mxu0 0.0
  %453 = vmatprep.subr.mxu0 0.0
  %454 = vmatpush1.msra.mxu0 0.0
  %455 = vmatprep.subr.mxu0 0.0
  %456 = vmatpush1.msra.mxu0 0.0
  %457 = vmatprep.subr.mxu0 0.0
  %458 = vmatpush1.msra.mxu0 0.0
  %459 = vmatprep.subr.mxu0 0.0
  %460 = vmatpush1.msra.mxu0 0.0
  %461 = vmatprep.subr.mxu0 0.0
  %462 = vmatpush1.msra.mxu0 0.0
  %463 = vmatprep.subr.mxu0 0.0
  %464 = vmatpush1.msra.mxu0 0.0
  %465 = vmatprep.subr.mxu0 0.0
  %466 = vmatpush1.msra.mxu0 0.0
  %467 = vmatprep.subr.mxu0 0.0
  %468 = vmatpush1.msra.mxu0 0.0
  %469 = vmatprep.subr.mxu0 0.0
  %470 = vmatpush1.msra.mxu0 0.0
  %471 = vmatprep.subr.mxu0 0.0
  %472 = vmatpush1.msra.mxu0 0.0
  %473 = vmatprep.subr.mxu0 0.0
  %474 = vmatpush1.msra.mxu0 0.0
  %475 = vmatprep.subr.mxu0 0.0
  %476 = vmatpush1.msra.mxu0 0.0
  %477 = vmatprep.subr.mxu0 0.0
  %478 = vmatpush1.msra.mxu0 0.0
  %479 = vmatprep.subr.mxu0 0.0
  %480 = vmatpush1.msra.mxu0 0.0
  %481 = vmatprep.subr.mxu0 0.0
  %482 = vmatpush1.msra.mxu0 0.0
  %483 = vmatprep.subr.mxu0 0.0
  %484 = vmatpush1.msra.mxu0 0.0
  %485 = vmatprep.subr.mxu0 0.0
  %486 = vmatpush1.msra.mxu0 0.0
  %487 = vmatprep.subr.mxu0 0.0
  %488 = vmatpush1.msra.mxu0 0.0
  %489 = vmatprep.subr.mxu0 0.0
  %490 = vmatpush1.msra.mxu0 0.0
  %491 = vmatprep.mubr.f32.mxu0 0.0
  %492 = vmatmul.mubr.f32.gmra.mrb[0].mxu0 %v425
  %v493 = vpop.f32.mrb[0].mxu0
  %v494 = vadd.f32 %v423, %v493
  %v495 = vpop.f32.mrb[0].mxu0
  %496 = vdwg.mxu0
  %vm497 = vcmask 7168
  %498 = vst.msk [vmem:[%s3] sm:$0xff] %vm497, %v494
  // Predicated region
  $region14: #{tpu_custom_call.1} parent=0 // pred_check
    _
  $region15: #{tpu_custom_call.1} parent=0 // pred_check_branch
    %500 = sbr.rel (0) target = $region17
  $region16: #{tpu_custom_call.1} parent=0 // pred_region
    _
  $region17: #{tpu_custom_call.1} parent=0 // pred_fallthru
    _
  // Predicated region
  $region18: #{tpu_custom_call.1} parent=0 // pred_check
    _
  $region19: #{tpu_custom_call.1} parent=0 // pred_check_branch
    %502 = sbr.rel (0) target = $region21
  $region20: #{tpu_custom_call.1} parent=0 // pred_region
    _
  $region21: #{tpu_custom_call.1} parent=0 // pred_fallthru
    _

</llo_original>
